<compile_context>
chip_gen: v7x
topology: tpu7x:2x2x1
jax: 0.10.0
libtpu: 0.0.40
codegen_flags: <defaults>
</compile_context>

<pallas_src>
import jax
import jax.numpy as jnp
from jax.experimental import pallas as pl
from jax.experimental.pallas import tpu as pltpu

# Synthetic config (model.py's cfg)
RNN_SIZE = 12
VAE_Z_SIZE = 8
IN_DIM = RNN_SIZE + RNN_SIZE + VAE_Z_SIZE   # 32
HIDDEN = 16
OUT_DIM = 1


def _round_up(n, m):
    return ((n + m - 1) // m) * m


def controller_kernel(x_ref, w1_ref, bw2_ref, o_ref):
    # x_ref: (TB, IN_DIM); w1_ref: (IN_DIM, HIDDEN);
    # bw2_ref: (2, HIDDEN) -- row 0 = layer-1 bias, row 1 = layer-2 weight;
    # o_ref: (TB, OUT_DIM) -- real (unpadded) output.
    b1 = bw2_ref[0:1, :]                                     # static views, no cost
    w2 = bw2_ref[1:2, :]
    h = jnp.dot(x_ref[...], w1_ref[...], preferred_element_type=jnp.float32)
    h = jnp.maximum(h + b1, 0.0)                             # bias add + ReLU (VPU)
    # Layer 2 (HIDDEN -> 1, no bias) on the VPU + XLU reduce: a 1-column MXU
    # matmul would pay a second push/drain for a sliver of the array.
    y = jnp.sum(h * w2, axis=-1, keepdims=True)              # (TB, 1)
    o_ref[...] = jnp.tanh(y)                                 # EUP, TB values


def controller_forward(x, w1, bw2, *, block_b=None):
    """x: (B, IN_DIM) f32; w1: (IN_DIM, HIDDEN); bw2: (2, HIDDEN) = [b1; w2].

    Returns (B, 1) f32.
    """
    B = x.shape[0]
    if block_b is None:
        if B <= 2048:
            block_b = B                          # single grid step: no tiling overhead
        else:
            # two big parallel tiles: lets v7x shard across its 2 TensorCores while
            # keeping per-step overhead negligible; fine (just 2 steps) on v5e/v6e.
            block_b = min(8192, _round_up(pl.cdiv(B, 2), 8))
    if block_b >= B:
        block_b = B                              # full-array block: no (8,·) constraint
    else:
        block_b = _round_up(block_b, 8)          # sublane granule for partial tiles

    b_pad = _round_up(B, block_b)
    if b_pad != B:                               # avoided on the default path
        x = jnp.pad(x, ((0, b_pad - B), (0, 0)))
    grid = (b_pad // block_b,)

    cost = pl.CostEstimate(
        flops=2 * b_pad * IN_DIM * HIDDEN + 2 * b_pad * HIDDEN,
        transcendentals=b_pad,
        bytes_accessed=4 * (b_pad * IN_DIM + IN_DIM * HIDDEN + 2 * HIDDEN
                            + b_pad * OUT_DIM),
    )

    out = pl.pallas_call(
        controller_kernel,
        out_shape=jax.ShapeDtypeStruct((b_pad, OUT_DIM), jnp.float32),
        grid=grid,
        in_specs=[
            pl.BlockSpec((block_b, IN_DIM), lambda i: (i, 0)),   # batch-row tiles
            pl.BlockSpec((IN_DIM, HIDDEN), lambda i: (0, 0)),    # weights resident
            pl.BlockSpec((2, HIDDEN), lambda i: (0, 0)),         # packed [b1; w2]
        ],
        out_specs=pl.BlockSpec((block_b, OUT_DIM), lambda i: (i, 0)),
        compiler_params=pltpu.CompilerParams(
            dimension_semantics=("parallel",)),                  # 2-TC shard on v7x
        cost_estimate=cost,
    )(x, w1, bw2)
    return out[:B] if b_pad != B else out


def init_params(key):
    """Deterministic synthetic parameter init (PyTorch-style uniform ranges)."""
    k1, k2, k3 = jax.random.split(key, 3)
    bound1 = 1.0 / jnp.sqrt(IN_DIM)
    bound2 = 1.0 / jnp.sqrt(HIDDEN)
    # Stored as (in, out) so the kernel computes x @ W (== x @ W_pt^T in PyTorch).
    w1 = jax.random.uniform(k1, (IN_DIM, HIDDEN), jnp.float32, -bound1, bound1)
    b1 = jax.random.uniform(k2, (1, HIDDEN), jnp.float32, -bound1, bound1)
    # Second-layer weight kept as a (1, HIDDEN) row for the VPU reduction path.
    w2 = jax.random.uniform(k3, (1, HIDDEN), jnp.float32, -bound2, bound2)
    return w1, b1, w2


def reference_forward(x, w1, b1, w2):
    h = jnp.maximum(x @ w1 + b1, 0.0)
    return jnp.tanh(h @ w2.T)


if __name__ == "__main__":
    key = jax.random.PRNGKey(0)
    kx, kp = jax.random.split(key)
    B = 64
    x = jax.random.normal(kx, (B, IN_DIM), jnp.float32)
    w1, b1, w2 = init_params(kp)
    bw2 = jnp.concatenate([b1, w2], axis=0)          # (2, HIDDEN), packed once

    # Default path: single grid step, no padding, real (B, 1) output.
    out = jax.block_until_ready(controller_forward(x, w1, bw2))
    ref = reference_forward(x, w1, b1, w2)
    assert out.shape == (B, OUT_DIM), out.shape
    assert jnp.allclose(out, ref, atol=1e-5, rtol=1e-5), "mismatch vs reference"

    # Also exercise the multi-tile parallel path (the large-B / v7x two-core case).
    out2 = jax.block_until_ready(controller_forward(x, w1, bw2, block_b=16))
    assert jnp.allclose(out2, ref, atol=1e-5, rtol=1e-5), "tiled path mismatch"

    print("KERNEL_OK")
</pallas_src>

<mosaic_0001>
module attributes {stable_mosaic.version = 11 : i64} {
  func.func @controller_kernel(%arg0: i32, %arg1: memref<64x32xf32, #tpu.memory_space<vmem>>, %arg2: memref<32x16xf32, #tpu.memory_space<vmem>>, %arg3: memref<2x16xf32, #tpu.memory_space<vmem>>, %arg4: memref<64x1xf32, #tpu.memory_space<vmem>>) attributes {dimension_semantics = [#tpu.dimension_semantics<parallel>], iteration_bounds = array<i64: 1>, scalar_prefetch = 0 : i64, scratch_operands = 0 : i64, tpu.core_type = #tpu.core_type<tc>, window_params = [{transform_indices = @transform_0, window_bounds = array<i64: 64, 32>}, {pipeline_mode = #tpu.pipeline_mode<synchronous>, transform_indices = @transform_1, window_bounds = array<i64: 32, 16>}, {pipeline_mode = #tpu.pipeline_mode<synchronous>, transform_indices = @transform_2, window_bounds = array<i64: 2, 16>}, {transform_indices = @transform_3, window_bounds = array<i64: 64, 1>}]} {
    %c0 = arith.constant 0 : index
    %c0_0 = arith.constant 0 : index
    %0 = vector.load %arg3[%c0, %c0_0] : memref<2x16xf32, #tpu.memory_space<vmem>>, vector<1x16xf32>
    %c1 = arith.constant 1 : index
    %c0_1 = arith.constant 0 : index
    %1 = vector.load %arg3[%c1, %c0_1] : memref<2x16xf32, #tpu.memory_space<vmem>>, vector<1x16xf32>
    %c0_2 = arith.constant 0 : index
    %c0_3 = arith.constant 0 : index
    %2 = vector.load %arg1[%c0_2, %c0_3] : memref<64x32xf32, #tpu.memory_space<vmem>>, vector<64x32xf32>
    %c0_4 = arith.constant 0 : index
    %c0_5 = arith.constant 0 : index
    %3 = vector.load %arg2[%c0_4, %c0_5] : memref<32x16xf32, #tpu.memory_space<vmem>>, vector<32x16xf32>
    %cst = arith.constant dense<0.000000e+00> : vector<64x16xf32>
    %4 = tpu.matmul %2, %3, %cst {dimension_numbers = #tpu.dot_dimension_numbers<[1], [0], [0], [1], [0, 0, 1, 1], [], []>} : vector<64x32xf32>, vector<32x16xf32>, vector<64x16xf32> -> vector<64x16xf32>
    %5 = vector.broadcast %0 : vector<1x16xf32> to vector<64x16xf32>
    %6 = arith.addf %4, %5 : vector<64x16xf32>
    %cst_6 = arith.constant 0.000000e+00 : f32
    %7 = vector.broadcast %cst_6 : f32 to vector<64x16xf32>
    %8 = arith.maximumf %6, %7 : vector<64x16xf32>
    %9 = vector.broadcast %1 : vector<1x16xf32> to vector<64x16xf32>
    %10 = arith.mulf %8, %9 : vector<64x16xf32>
    %cst_7 = arith.constant dense<0.000000e+00> : vector<64xf32>
    %11 = vector.multi_reduction <add>, %10, %cst_7 [1] : vector<64x16xf32> to vector<64xf32>
    %12 = vector.shape_cast %11 : vector<64xf32> to vector<64x1xf32>
    %13 = math.tanh %12 : vector<64x1xf32>
    %c0_8 = arith.constant 0 : index
    %c0_9 = arith.constant 0 : index
    %14 = vector.load %arg4[%c0_8, %c0_9] : memref<64x1xf32, #tpu.memory_space<vmem>>, vector<64x1xf32>
    tpu.vector_store %arg4[%c0_8, %c0_9], %13 {strides = array<i32>} : memref<64x1xf32, #tpu.memory_space<vmem>>, vector<64x1xf32>,
    return
  }
  func.func @transform_0(%arg0: i32) -> (i32, i32) {
    %c0_i32 = arith.constant 0 : i32
    %c0_i32_0 = arith.constant 0 : i32
    return %arg0, %c0_i32 : i32, i32
  }
  func.func @transform_1(%arg0: i32) -> (i32, i32) {
    %c0_i32 = arith.constant 0 : i32
    %c0_i32_0 = arith.constant 0 : i32
    %c0_i32_1 = arith.constant 0 : i32
    return %c0_i32, %c0_i32_0 : i32, i32
  }
  func.func @transform_2(%arg0: i32) -> (i32, i32) {
    %c0_i32 = arith.constant 0 : i32
    %c0_i32_0 = arith.constant 0 : i32
    %c0_i32_1 = arith.constant 0 : i32
    return %c0_i32, %c0_i32_0 : i32, i32
  }
  func.func @transform_3(%arg0: i32) -> (i32, i32) {
    %c0_i32 = arith.constant 0 : i32
    %c0_i32_0 = arith.constant 0 : i32
    return %arg0, %c0_i32 : i32, i32
  }
}

</mosaic_0001>

<llo_original>
// kernel: tpu_custom_call.1
$region0: #{tpu_custom_call.1}
  #allocation0 [shape = 'u32[]', space=smem, size = 0x4, offset = 0x4, fixed_abs, tag = 'smem constant byte address 0x4 - core index']
  #allocation1 [shape = 'u32[144,128]{1,0:T(1,128)}', space=vmem, size = 0x12000, scoped, tag = 'internal scratch']
  %s0 = inlined_call_operand.vmem [shape: f32[64,32], index: 0, kind: input, shape index: {}]
  %s1 = inlined_call_operand.vmem [shape: f32[32,16], index: 1, kind: input, shape index: {}]
  %s2 = inlined_call_operand.vmem [shape: f32[2,16], index: 2, kind: input, shape index: {}]
  %s3 = inlined_call_operand.vmem [shape: f32[64,1], index: 3, kind: output, shape index: {}]
  %s4 = sld [smem:[#allocation0]]
  $region22: #{tpu_custom_call.1} parent=0
    _
  %s6 = ssub.s32 1, %s4
  %s7 = scalar_select 0, %s6, %s4
  // Predicated region
  $region2: #{tpu_custom_call.1} parent=0 // pred_check
    _
  $region3: #{tpu_custom_call.1} parent=0 // pred_check_branch
    %9 = sbr.rel (0) target = $region5
  $region4: #{tpu_custom_call.1} parent=0 // pred_region
    _
  $region5: #{tpu_custom_call.1} parent=0 // pred_fallthru
    _
  // Predicated region
  $region6: #{tpu_custom_call.1} parent=0 // pred_check
    _
  $region7: #{tpu_custom_call.1} parent=0 // pred_check_branch
    %11 = sbr.rel (0) target = $region9
  $region8: #{tpu_custom_call.1} parent=0 // pred_region
    _
  $region9: #{tpu_custom_call.1} parent=0 // pred_fallthru
    _
  // Predicated region
  $region10: #{tpu_custom_call.1} parent=0 // pred_check
    _
  $region11: #{tpu_custom_call.1} parent=0 // pred_check_branch
    %13 = sbr.rel (0) target = $region13
  $region12: #{tpu_custom_call.1} parent=0 // pred_region
    _
  $region13: #{tpu_custom_call.1} parent=0 // pred_fallthru
    _
  %v14 = vld [vmem:[%s2] sm:$0x1]
  %v15 = vld [vmem:[%s2 + $0x1] sm:$0x1]
  %v16 = vld [vmem:[%s0] sm:$0xff]
  %v17 = vld [vmem:[%s0 + $0x8] sm:$0xff]
  %v18 = vld [vmem:[%s0 + $0x10] sm:$0xff]
  %v19 = vld [vmem:[%s0 + $0x18] sm:$0xff]
  %v20 = vld [vmem:[%s0 + $0x20] sm:$0xff]
  %v21 = vld [vmem:[%s0 + $0x28] sm:$0xff]
  %v22 = vld [vmem:[%s0 + $0x30] sm:$0xff]
  %v23 = vld [vmem:[%s0 + $0x38] sm:$0xff]
  %v24 = vld [vmem:[%s1] sm:$0xff]
  %v25 = vld [vmem:[%s1 + $0x8] sm:$0xff]
  %v26 = vld [vmem:[%s1 + $0x10] sm:$0xff]
  %v27 = vld [vmem:[%s1 + $0x18] sm:$0xff]
  %v28 = vlaneseq
  %v29 = vshrl.u32 %v28, 7
  %v30 = vsub.s32 0, %v29
  %v31 = vrot.slane %v14, %v30
  %vm32 = vcmask 261120
  %v34 = vsel %vm32, %v16, 0
  %v37 = vsel %vm32, %v17, 0
  %v40 = vsel %vm32, %v18, 0
  %v43 = vsel %vm32, %v19, 0
  %v46 = vsel %vm32, %v20, 0
  %v49 = vsel %vm32, %v21, 0
  %v52 = vsel %vm32, %v22, 0
  %v55 = vsel %vm32, %v23, 0
  %57 = vmatprep.subr.mxu0 0.0
  %58 = vmatpush1.msra.mxu0 %v24
  %59 = vmatprep.subr.mxu0 0.0
  %60 = vmatpush1.msra.mxu0 %v25
  %61 = vmatprep.subr.mxu0 0.0
  %62 = vmatpush1.msra.mxu0 %v26
  %63 = vmatprep.subr.mxu0 0.0
  %64 = vmatpush1.msra.mxu0 %v27
  %65 = vmatprep.subr.mxu0 0.0
  %66 = vmatpush1.msra.mxu0 0.0
  %67 = vmatprep.subr.mxu0 0.0
  %68 = vmatpush1.msra.mxu0 0.0
  %69 = vmatprep.subr.mxu0 0.0
  %70 = vmatpush1.msra.mxu0 0.0
  %71 = vmatprep.subr.mxu0 0.0
  %72 = vmatpush1.msra.mxu0 0.0
  %73 = vmatprep.subr.mxu0 0.0
  %74 = vmatpush1.msra.mxu0 0.0
  %75 = vmatprep.subr.mxu0 0.0
  %76 = vmatpush1.msra.mxu0 0.0
  %77 = vmatprep.subr.mxu0 0.0
  %78 = vmatpush1.msra.mxu0 0.0
  %79 = vmatprep.subr.mxu0 0.0
  %80 = vmatpush1.msra.mxu0 0.0
  %81 = vmatprep.subr.mxu0 0.0
  %82 = vmatpush1.msra.mxu0 0.0
  %83 = vmatprep.subr.mxu0 0.0
  %84 = vmatpush1.msra.mxu0 0.0
  %85 = vmatprep.subr.mxu0 0.0
  %86 = vmatpush1.msra.mxu0 0.0
  %87 = vmatprep.subr.mxu0 0.0
  %88 = vmatpush1.msra.mxu0 0.0
  %89 = vmatprep.subr.mxu0 0.0
  %90 = vmatpush1.msra.mxu0 0.0
  %91 = vmatprep.subr.mxu0 0.0
  %92 = vmatpush1.msra.mxu0 0.0
  %93 = vmatprep.subr.mxu0 0.0
  %94 = vmatpush1.msra.mxu0 0.0
  %95 = vmatprep.subr.mxu0 0.0
  %96 = vmatpush1.msra.mxu0 0.0
  %97 = vmatprep.subr.mxu0 0.0
  %98 = vmatpush1.msra.mxu0 0.0
  %99 = vmatprep.subr.mxu0 0.0
  %100 = vmatpush1.msra.mxu0 0.0
  %101 = vmatprep.subr.mxu0 0.0
  %102 = vmatpush1.msra.mxu0 0.0
  %103 = vmatprep.subr.mxu0 0.0
  %104 = vmatpush1.msra.mxu0 0.0
  %105 = vmatprep.subr.mxu0 0.0
  %106 = vmatpush1.msra.mxu0 0.0
  %107 = vmatprep.subr.mxu0 0.0
  %108 = vmatpush1.msra.mxu0 0.0
  %109 = vmatprep.subr.mxu0 0.0
  %110 = vmatpush1.msra.mxu0 0.0
  %111 = vmatprep.subr.mxu0 0.0
  %112 = vmatpush1.msra.mxu0 0.0
  %113 = vmatprep.subr.mxu0 0.0
  %114 = vmatpush1.msra.mxu0 0.0
  %115 = vmatprep.subr.mxu0 0.0
  %116 = vmatpush1.msra.mxu0 0.0
  %117 = vmatprep.subr.mxu0 0.0
  %118 = vmatpush1.msra.mxu0 0.0
  %119 = vmatprep.subr.mxu0 0.0
  %120 = vmatpush1.msra.mxu0 0.0
  %121 = vmatprep.mubr.f32.mxu0 0.0
  %122 = vmatmul.mubr.f32.gmra.mrb[0].mxu0 %v34
  %v123 = vpop.f32.mrb[0].mxu0
  %v124 = vadd.f32 %v31, %v123
  %v125 = vpop.f32.mrb[0].mxu0
  %126 = vmatprep.mubr.f32.mxu0 0.0
  %127 = vmatmul.mubr.f32.gmra.mrb[0].mxu0 %v37
  %v128 = vpop.f32.mrb[0].mxu0
  %v129 = vadd.f32 %v31, %v128
  %v130 = vpop.f32.mrb[0].mxu0
  %131 = vmatprep.mubr.f32.mxu0 0.0
  %132 = vmatmul.mubr.f32.gmra.mrb[0].mxu0 %v40
  %v133 = vpop.f32.mrb[0].mxu0
  %v134 = vadd.f32 %v31, %v133
  %v135 = vpop.f32.mrb[0].mxu0
  %136 = vmatprep.mubr.f32.mxu0 0.0
  %137 = vmatmul.mubr.f32.gmra.mrb[0].mxu0 %v43
  %v138 = vpop.f32.mrb[0].mxu0
  %v139 = vadd.f32 %v31, %v138
  %v140 = vpop.f32.mrb[0].mxu0
  %141 = vmatprep.mubr.f32.mxu0 0.0
  %142 = vmatmul.mubr.f32.gmra.mrb[0].mxu0 %v46
  %v143 = vpop.f32.mrb[0].mxu0
  %v144 = vadd.f32 %v31, %v143
  %v145 = vpop.f32.mrb[0].mxu0
  %146 = vmatprep.mubr.f32.mxu0 0.0
  %147 = vmatmul.mubr.f32.gmra.mrb[0].mxu0 %v49
  %v148 = vpop.f32.mrb[0].mxu0
  %v149 = vadd.f32 %v31, %v148
  %v150 = vpop.f32.mrb[0].mxu0
  %151 = vmatprep.mubr.f32.mxu0 0.0
  %152 = vmatmul.mubr.f32.gmra.mrb[0].mxu0 %v52
  %v153 = vpop.f32.mrb[0].mxu0
  %v154 = vadd.f32 %v31, %v153
  %v155 = vpop.f32.mrb[0].mxu0
  %156 = vmatprep.mubr.f32.mxu0 0.0
  %157 = vmatmul.mubr.f32.gmra.mrb[0].mxu0 %v55
  %v158 = vpop.f32.mrb[0].mxu0
  %v159 = vadd.f32 %v31, %v158
  %v160 = vpop.f32.mrb[0].mxu0
  %161 = vdwg.mxu0
  %v162 = vmax.f32 %v124, 0.0
  %v163 = vmax.f32 %v129, 0.0
  %v164 = vmax.f32 %v134, 0.0
  %v165 = vmax.f32 %v139, 0.0
  %v166 = vmax.f32 %v144, 0.0
  %v167 = vmax.f32 %v149, 0.0
  %v168 = vmax.f32 %v154, 0.0
  %v169 = vmax.f32 %v159, 0.0
  %v170 = vlaneseq
  %v171 = vshrl.u32 %v170, 7
  %v172 = vsub.s32 0, %v171
  %v173 = vrot.slane %v15, %v172
  %v174 = vmul.f32 %v162, %v173
  %v175 = vmul.f32 %v163, %v173
  %v176 = vmul.f32 %v164, %v173
  %v177 = vmul.f32 %v165, %v173
  %v178 = vmul.f32 %v166, %v173
  %v179 = vmul.f32 %v167, %v173
  %v180 = vmul.f32 %v168, %v173
  %v181 = vmul.f32 %v169, %v173
  %vm182 = vcmask 130048
  %v183 = vsel %vm182, %v174, 0.0
  %184 = vadd.xlane.f32.xlu0 %v183
  %v185 = vpop.xlane.xlu0 %184
  %v186 = vsel %vm182, %v175, 0.0
  %187 = vadd.xlane.f32.xlu0 %v186
  %v188 = vpop.xlane.xlu0 %187
  %v189 = vsel %vm182, %v176, 0.0
  %190 = vadd.xlane.f32.xlu0 %v189
  %v191 = vpop.xlane.xlu0 %190
  %v192 = vsel %vm182, %v177, 0.0
  %193 = vadd.xlane.f32.xlu0 %v192
  %v194 = vpop.xlane.xlu0 %193
  %v195 = vsel %vm182, %v178, 0.0
  %196 = vadd.xlane.f32.xlu0 %v195
  %v197 = vpop.xlane.xlu0 %196
  %v198 = vsel %vm182, %v179, 0.0
  %199 = vadd.xlane.f32.xlu0 %v198
  %v200 = vpop.xlane.xlu0 %199
  %v201 = vsel %vm182, %v180, 0.0
  %202 = vadd.xlane.f32.xlu0 %v201
  %v203 = vpop.xlane.xlu0 %202
  %v204 = vsel %vm182, %v181, 0.0
  %205 = vadd.xlane.f32.xlu0 %v204
  %v206 = vpop.xlane.xlu0 %205
  %v207 = vtanh.pop %v185
  %v208 = vtanh.pop %v188
  %v209 = vtanh.pop %v191
  %v210 = vtanh.pop %v194
  %v211 = vtanh.pop %v197
  %v212 = vtanh.pop %v200
  %v213 = vtanh.pop %v203
  %v214 = vtanh.pop %v206
  %vm215 = vcmask 7168
  %216 = vst.msk [vmem:[%s3] sm:$0xff] %vm215, %v207
  %217 = vst.msk [vmem:[%s3 + $0x8] sm:$0xff] %vm215, %v208
  %218 = vst.msk [vmem:[%s3 + $0x10] sm:$0xff] %vm215, %v209
  %219 = vst.msk [vmem:[%s3 + $0x18] sm:$0xff] %vm215, %v210
  %220 = vst.msk [vmem:[%s3 + $0x20] sm:$0xff] %vm215, %v211
  %221 = vst.msk [vmem:[%s3 + $0x28] sm:$0xff] %vm215, %v212
  %222 = vst.msk [vmem:[%s3 + $0x30] sm:$0xff] %vm215, %v213
  %223 = vst.msk [vmem:[%s3 + $0x38] sm:$0xff] %vm215, %v214
  // Predicated region
  $region14: #{tpu_custom_call.1} parent=0 // pred_check
    _
  $region15: #{tpu_custom_call.1} parent=0 // pred_check_branch
    %225 = sbr.rel (0) target = $region17
  $region16: #{tpu_custom_call.1} parent=0 // pred_region
    _
  $region17: #{tpu_custom_call.1} parent=0 // pred_fallthru
    _
  // Predicated region
  $region18: #{tpu_custom_call.1} parent=0 // pred_check
    _
  $region19: #{tpu_custom_call.1} parent=0 // pred_check_branch
    %227 = sbr.rel (0) target = $region21
  $region20: #{tpu_custom_call.1} parent=0 // pred_region
    _
  $region21: #{tpu_custom_call.1} parent=0 // pred_fallthru
    _

</llo_original>
